<compile_context>
chip_gen: v5e
topology: v5e:2x2
jax: 0.10.0
libtpu: 0.0.40
codegen_flags: <defaults>
</compile_context>

<pallas_src>
import math

import jax
import jax.numpy as jnp
import numpy as np
from jax.experimental import pallas as pl
from jax.experimental.pallas import tpu as pltpu


# ----------------------------- kernels ------------------------------------ #

def ltf_native_kernel(mT_ref, b_ref, x_ref, o_ref):
    # mT_ref: (P, S)  b_ref: (P, 1) f32  x_ref: (1, S, TC)  o_ref: (1, P, TC) f32
    x = x_ref[0]                                                       # (S, TC)
    out = jnp.dot(mT_ref[...], x, preferred_element_type=jnp.float32)  # (P, TC)
    o_ref[0] = (out + b_ref[...]).astype(o_ref.dtype)


def ltf_flat_kernel(mT_ref, b_ref, x_ref, o_ref):
    # mT_ref: (P, S)  b_ref: (P, 1) f32  x_ref: (S, TF)  o_ref: (P, TF) f32
    out = jnp.dot(mT_ref[...], x_ref[...],
                  preferred_element_type=jnp.float32)                  # (P, TF)
    o_ref[...] = (out + b_ref[...]).astype(o_ref.dtype)


# ------------------------- folded-operator build --------------------------- #

def _build_conv_dct_matrix(seq_len: int, in_len: int) -> np.ndarray:
    """A = P @ D.T / in_len  with
       P : (seq_len, in_len) -- stride-2 pairwise sum / sqrt(2) (depthwise conv,
                                right zero-pad when seq_len is odd)
       D : (in_len, in_len)  -- orthonormal DCT-II matrix (scipy norm='ortho')."""
    S, N = seq_len, in_len
    P = np.zeros((S, N), dtype=np.float64)
    for t in range(N):
        if 2 * t < S:
            P[2 * t, t] = 1.0 / math.sqrt(2.0)
        if 2 * t + 1 < S:
            P[2 * t + 1, t] = 1.0 / math.sqrt(2.0)
    n = np.arange(N)
    k = np.arange(N)[:, None]
    D = 2.0 * np.cos(np.pi * (2.0 * n[None, :] + 1.0) * k / (2.0 * N))
    scale = np.where(k == 0, np.sqrt(1.0 / (4.0 * N)), np.sqrt(1.0 / (2.0 * N)))
    D = D * scale                                                      # y = x @ D.T
    A = P @ D.T / float(N)
    return A.astype(np.float32)


_LANE_TILE_CAP = 1024  # multiple of 256 (fills v6e/v7x MXU), fits VMEM after bf16


def _pick_lane_tile(n: int) -> int:
    """Lane (last-dim) tile: full extent if small, else a 128-multiple cap
    (ragged last block is masked by Pallas)."""
    if n <= _LANE_TILE_CAP:
        return n                      # full-extent block is always legal
    if n % 128 == 0:
        return min(n, _LANE_TILE_CAP)
    return _LANE_TILE_CAP             # multiple of 128; last block masked


def _vmem_limit_bytes(S, P, TL, x_bytes, w_bytes) -> int:
    # double-buffered x + out tiles, double-buffered pinned weight, padded bias
    ws = (2 * S * TL * x_bytes + 2 * P * TL * 4
          + 2 * P * S * w_bytes + 2 * P * 128 * 4)
    return int(min(max(2 * ws, 32 << 20), 48 << 20))


def make_model(seq_len: int, pred_len: int, channels: int, hidden: int = 16,
               seed: int = 0, compute_dtype=jnp.bfloat16):
    in_len = seq_len // 2 + 1 if seq_len % 2 != 0 else seq_len // 2

    key = jax.random.PRNGKey(seed)
    k1, k2, k3, k4 = jax.random.split(key, 4)
    # nn.Linear default init: U(-1/sqrt(fan_in), 1/sqrt(fan_in))
    lim1 = 1.0 / math.sqrt(in_len)
    lim2 = 1.0 / math.sqrt(hidden)
    w1 = jax.random.uniform(k1, (hidden, in_len), jnp.float32, -lim1, lim1)
    b1 = jax.random.uniform(k2, (hidden,), jnp.float32, -lim1, lim1)
    w2 = jax.random.uniform(k3, (pred_len, hidden), jnp.float32, -lim2, lim2)
    b2 = jax.random.uniform(k4, (pred_len,), jnp.float32, -lim2, lim2)

    A = jnp.asarray(_build_conv_dct_matrix(seq_len, in_len))           # (S, N)
    w1t = w1.T                                                         # (N, H)
    w2t = w2.T                                                         # (H, P)

    # ---- fold the whole linear chain + mean handling into one (S, P) matrix ----
    M = A @ w1t @ w2t                                                  # (S, P)
    bias = b1 @ w2t + b2                                               # (P,)
    colsum = jnp.sum(M, axis=0)                                        # (P,)
    ones_col = jnp.ones((seq_len, 1), jnp.float32)
    M_fold = M + (1.0 / seq_len) * ones_col @ (1.0 - colsum)[None, :]  # (S, P)

    # bf16 folded weight (f32 accumulation kept in-kernel via preferred_element_type)
    mT = jnp.asarray(M_fold.T, compute_dtype)                          # (P, S)
    b_col = jnp.asarray(bias.reshape(pred_len, 1), jnp.float32)        # (P, 1)

    x_bytes = jnp.dtype(compute_dtype).itemsize
    w_bytes = x_bytes

    # -------------------- native layout path (C >= 128) -------------------- #
    def _forward_native(x):
        B, S, C = x.shape
        TC = _pick_lane_tile(C)
        xc = x.astype(compute_dtype)
        grid = (pl.cdiv(C, TC), B)     # channel axis first: even v7x core split
        cost = pl.CostEstimate(
            flops=2 * B * C * S * pred_len,
            transcendentals=0,
            bytes_accessed=(x_bytes * B * S * C + 4 * B * pred_len * C
                            + w_bytes * pred_len * S + 4 * pred_len),
        )
        return pl.pallas_call(
            ltf_native_kernel,
            out_shape=jax.ShapeDtypeStruct((B, pred_len, C), jnp.float32),
            grid=grid,
            in_specs=[
                pl.BlockSpec((pred_len, S), lambda c, b: (0, 0)),   # pinned weight
                pl.BlockSpec((pred_len, 1), lambda c, b: (0, 0)),   # pinned bias
                pl.BlockSpec((1, S, TC), lambda c, b: (b, 0, c)),   # x tile
            ],
            out_specs=pl.BlockSpec((1, pred_len, TC), lambda c, b: (b, 0, c)),
            compiler_params=pltpu.CompilerParams(
                dimension_semantics=("parallel", "parallel"),
                vmem_limit_bytes=_vmem_limit_bytes(S, pred_len, TC,
                                                   x_bytes, w_bytes)),
            cost_estimate=cost,
        )(mT, b_col, xc)

    # -------------------- small-C lane-packed path (C < 128) --------------- #
    def _forward_flat(x):
        B, S, C = x.shape
        F = B * C
        # pack batch*channel into the lane dim: one cheap relayout pass
        x2 = jnp.transpose(x, (1, 0, 2)).reshape(S, F).astype(compute_dtype)
        TF = _pick_lane_tile(F)
        grid = (pl.cdiv(F, TF),)
        cost = pl.CostEstimate(
            flops=2 * F * S * pred_len,
            transcendentals=0,
            bytes_accessed=(x_bytes * S * F + 4 * pred_len * F
                            + w_bytes * pred_len * S + 4 * pred_len),
        )
        out2 = pl.pallas_call(
            ltf_flat_kernel,
            out_shape=jax.ShapeDtypeStruct((pred_len, F), jnp.float32),
            grid=grid,
            in_specs=[
                pl.BlockSpec((pred_len, S), lambda f: (0, 0)),      # pinned weight
                pl.BlockSpec((pred_len, 1), lambda f: (0, 0)),      # pinned bias
                pl.BlockSpec((S, TF), lambda f: (0, f)),            # x lane tile
            ],
            out_specs=pl.BlockSpec((pred_len, TF), lambda f: (0, f)),
            compiler_params=pltpu.CompilerParams(
                dimension_semantics=("parallel",),
                vmem_limit_bytes=_vmem_limit_bytes(S, pred_len, TF,
                                                   x_bytes, w_bytes)),
            cost_estimate=cost,
        )(mT, b_col, x2)
        return jnp.transpose(out2.reshape(pred_len, B, C), (1, 0, 2))

    def forward(x):
        # x: (B, S, C) float32  ->  out: (B, pred_len, C) float32
        B, S, C = x.shape
        assert S == seq_len and C == channels
        if C >= 128:
            return _forward_native(x)
        return _forward_flat(x)

    params = dict(A=A, w1t=w1t, b1=b1.reshape(1, hidden), w2t=w2t,
                  b2=b2.reshape(1, pred_len), in_len=in_len)
    return forward, params


# ------------------------------ reference ---------------------------------- #

def reference(x, params, seq_len, pred_len):
    """Pure-JAX reference following the PyTorch code step by step."""
    B, S, C = x.shape
    xt = jnp.transpose(x, (0, 2, 1))                       # (B, C, S)
    seq_mean = jnp.mean(xt, axis=-1, keepdims=True)
    xc = xt - seq_mean
    if seq_len % 2 != 0:
        xc = jnp.pad(xc, ((0, 0), (0, 0), (0, 1)))
    # depthwise conv1d, weight [1,1]/sqrt(2), stride 2
    s1 = (xc[..., 0::2] + xc[..., 1::2]) / math.sqrt(2.0)  # (B, C, N)
    N = s1.shape[-1]
    n = jnp.arange(N)
    k = jnp.arange(N)[:, None]
    D = 2.0 * jnp.cos(jnp.pi * (2.0 * n[None, :] + 1.0) * k / (2.0 * N))
    scale = jnp.where(k == 0, jnp.sqrt(1.0 / (4.0 * N)), jnp.sqrt(1.0 / (2.0 * N)))
    D = (D * scale).astype(jnp.float32)
    s1 = (s1 @ D.T) / N
    h1 = s1 @ params["w1t"] + params["b1"]
    pred = h1 @ params["w2t"] + params["b2"]
    out = pred + seq_mean
    return jnp.transpose(out, (0, 2, 1))                   # (B, P, C)


if __name__ == "__main__":
    batch, seq_len, channels, pred_len = 2, 8, 4, 8

    key = jax.random.PRNGKey(0)
    x = jax.random.normal(key, (batch, seq_len, channels), dtype=jnp.float32)

    # default bf16 compute path (small C -> lane-packed flat kernel)
    forward_bf16, params = make_model(seq_len, pred_len, channels, hidden=16, seed=0)
    out = jax.block_until_ready(forward_bf16(x))
    ref = jax.block_until_ready(reference(x, params, seq_len, pred_len))
    assert out.shape == (batch, pred_len, channels)
    # bf16 inputs + f32 accumulation + folded FP re-association -> loose tolerance
    np.testing.assert_allclose(np.asarray(out), np.asarray(ref), rtol=2e-2, atol=2e-2)

    # f32 compute path: tight tolerance (only FP re-association from the fold)
    forward_f32, _ = make_model(seq_len, pred_len, channels, hidden=16, seed=0,
                                compute_dtype=jnp.float32)
    out32 = jax.block_until_ready(forward_f32(x))
    np.testing.assert_allclose(np.asarray(out32), np.asarray(ref), rtol=1e-4, atol=1e-5)

    # also exercise the native lane-dense path (C >= 128)
    channels2 = 128
    x_big = jax.random.normal(jax.random.PRNGKey(1),
                              (batch, seq_len, channels2), dtype=jnp.float32)
    forward_big, params_big = make_model(seq_len, pred_len, channels2,
                                         hidden=16, seed=0)
    out_big = jax.block_until_ready(forward_big(x_big))
    ref_big = jax.block_until_ready(reference(x_big, params_big, seq_len, pred_len))
    assert out_big.shape == (batch, pred_len, channels2)
    np.testing.assert_allclose(np.asarray(out_big), np.asarray(ref_big),
                               rtol=2e-2, atol=2e-2)

    print("KERNEL_OK")
</pallas_src>

<mosaic_0001>
module attributes {stable_mosaic.version = 11 : i64} {
  func.func @ltf_flat_kernel(%arg0: i32, %arg1: memref<8x8xbf16, #tpu.memory_space<vmem>>, %arg2: memref<8x1xf32, #tpu.memory_space<vmem>>, %arg3: memref<8x8xbf16, #tpu.memory_space<vmem>>, %arg4: memref<8x8xf32, #tpu.memory_space<vmem>>) attributes {dimension_semantics = [#tpu.dimension_semantics<parallel>], iteration_bounds = array<i64: 1>, scalar_prefetch = 0 : i64, scratch_operands = 0 : i64, tpu.core_type = #tpu.core_type<tc>, window_params = [{pipeline_mode = #tpu.pipeline_mode<synchronous>, transform_indices = @transform_0, window_bounds = array<i64: 8, 8>}, {pipeline_mode = #tpu.pipeline_mode<synchronous>, transform_indices = @transform_1, window_bounds = array<i64: 8, 1>}, {transform_indices = @transform_2, window_bounds = array<i64: 8, 8>}, {transform_indices = @transform_3, window_bounds = array<i64: 8, 8>}]} {
    %c0 = arith.constant 0 : index
    %c0_0 = arith.constant 0 : index
    %0 = vector.load %arg1[%c0, %c0_0] : memref<8x8xbf16, #tpu.memory_space<vmem>>, vector<8x8xbf16>
    %c0_1 = arith.constant 0 : index
    %c0_2 = arith.constant 0 : index
    %1 = vector.load %arg3[%c0_1, %c0_2] : memref<8x8xbf16, #tpu.memory_space<vmem>>, vector<8x8xbf16>
    %cst = arith.constant dense<0.000000e+00> : vector<8x8xf32>
    %2 = tpu.matmul %0, %1, %cst {dimension_numbers = #tpu.dot_dimension_numbers<[1], [0], [0], [1], [0, 0, 1, 1], [], []>} : vector<8x8xbf16>, vector<8x8xbf16>, vector<8x8xf32> -> vector<8x8xf32>
    %c0_3 = arith.constant 0 : index
    %c0_4 = arith.constant 0 : index
    %3 = vector.load %arg2[%c0_3, %c0_4] : memref<8x1xf32, #tpu.memory_space<vmem>>, vector<8x1xf32>
    %4 = vector.broadcast %3 : vector<8x1xf32> to vector<8x8xf32>
    %5 = arith.addf %2, %4 : vector<8x8xf32>
    %c0_5 = arith.constant 0 : index
    %c0_6 = arith.constant 0 : index
    %6 = vector.load %arg4[%c0_5, %c0_6] : memref<8x8xf32, #tpu.memory_space<vmem>>, vector<8x8xf32>
    tpu.vector_store %arg4[%c0_5, %c0_6], %5 {strides = array<i32>} : memref<8x8xf32, #tpu.memory_space<vmem>>, vector<8x8xf32>,
    return
  }
  func.func @transform_0(%arg0: i32) -> (i32, i32) {
    %c0_i32 = arith.constant 0 : i32
    %c0_i32_0 = arith.constant 0 : i32
    %c0_i32_1 = arith.constant 0 : i32
    return %c0_i32, %c0_i32_0 : i32, i32
  }
  func.func @transform_1(%arg0: i32) -> (i32, i32) {
    %c0_i32 = arith.constant 0 : i32
    %c0_i32_0 = arith.constant 0 : i32
    %c0_i32_1 = arith.constant 0 : i32
    return %c0_i32, %c0_i32_0 : i32, i32
  }
  func.func @transform_2(%arg0: i32) -> (i32, i32) {
    %c0_i32 = arith.constant 0 : i32
    %c0_i32_0 = arith.constant 0 : i32
    return %c0_i32, %arg0 : i32, i32
  }
  func.func @transform_3(%arg0: i32) -> (i32, i32) {
    %c0_i32 = arith.constant 0 : i32
    %c0_i32_0 = arith.constant 0 : i32
    return %c0_i32, %arg0 : i32, i32
  }
}

</mosaic_0001>

<llo_original>
// kernel: tpu_custom_call.1
$region0: #{tpu_custom_call.1}
  #allocation0 [shape = 'u32[]', space=smem, size = 0x4, offset = 0x4, fixed_abs, tag = 'smem constant byte address 0x4 - core index']
  #allocation1 [shape = 'u32[72,128]{1,0:T(1,128)}', space=vmem, size = 0x9000, scoped, tag = 'internal scratch']
  %s0 = inlined_call_operand.vmem [shape: bf16[8,8], index: 0, kind: input, shape index: {}]
  %s1 = inlined_call_operand.vmem [shape: f32[8,1], index: 1, kind: input, shape index: {}]
  %s2 = inlined_call_operand.vmem [shape: bf16[8,8], index: 2, kind: input, shape index: {}]
  %s3 = inlined_call_operand.hbm [shape: f32[8,8], index: 3, kind: output, shape index: {}]
  %s4 = sld [smem:[#allocation0]]
  $region22: #{tpu_custom_call.1} parent=0
    _
  %s6 = ssub.s32 1, %s4
  %s7 = scalar_select 0, %s6, %s4
  $region1: #{tpu_custom_call.1} parent=0
    #allocation2 [shape = 'u8[4096]{0}', space=vmem, size = 0x1000, scoped, tag = 'output window, operand 0, single buffered']
    #allocation3 [shape = 's32[1]{0}', space=sflag, size = 0x4, scoped, tag = 'scoped memory for tpu_custom_call.1']
    %8 = vsyncpa [#allocation3], 0
    // Predicated region
    $region2: #{tpu_custom_call.1} parent=1 // pred_check
      _
    $region3: #{tpu_custom_call.1} parent=1 // pred_check_branch
      %10 = sbr.rel (0) target = $region5
    $region4: #{tpu_custom_call.1} parent=1 // pred_region
      _
    $region5: #{tpu_custom_call.1} parent=1 // pred_fallthru
      _
    // Predicated region
    $region6: #{tpu_custom_call.1} parent=1 // pred_check
      _
    $region7: #{tpu_custom_call.1} parent=1 // pred_check_branch
      %12 = sbr.rel (0) target = $region9
    $region8: #{tpu_custom_call.1} parent=1 // pred_region
      _
    $region9: #{tpu_custom_call.1} parent=1 // pred_fallthru
      _
    // Predicated region
    $region10: #{tpu_custom_call.1} parent=1 // pred_check
      _
    $region11: #{tpu_custom_call.1} parent=1 // pred_check_branch
      %14 = sbr.rel (0) target = $region13
    $region12: #{tpu_custom_call.1} parent=1 // pred_region
      _
    $region13: #{tpu_custom_call.1} parent=1 // pred_fallthru
      _
    %v16 = vld [vmem:[%s0] sm:$0xf]
    %v17 = vld [vmem:[%s2] sm:$0xf]
    %v18 = vld [vmem:[%s1] sm:$0xff]
    %20 = vset.pattern.permute.xlu0 0
    %21 = vperm.xlu0 %20, %v18
    %v22 = vpop.permute.xlu0 %21
    %vm24 = vcmask 64512
    %v26 = vsel %vm24, %v16, 0
    %vm28 = vcmask 1043456
    %v30 = vsel %vm28, %v17, 0
    %32 = vmatpush.bf16.msra.mxu0 0
    %33 = vmatpush.bf16.msra.mxu0 0
    %34 = vmatpush.bf16.msra.mxu0 0
    %35 = vmatpush.bf16.msra.mxu0 0
    %36 = vmatpush.bf16.msra.mxu0 0
    %37 = vmatpush.bf16.msra.mxu0 0
    %38 = vmatpush.bf16.msra.mxu0 0
    %39 = vmatpush.bf16.msra.mxu0 %v30
    %40 = vmatmul.bf16.gmra.mxu0 %v26
    %v41 = vpop.f32.mrf.mxu0
    %v42 = vadd.f32 %v22, %v41
    %v43 = vpop.f32.mrf.mxu0
    %44 = vdwg.mxu0
    %45 = vst.msk [vmem:[#allocation2] sm:$0xff] %vm24, %v42
    // Predicated region
    $region14: #{tpu_custom_call.1} parent=1 // pred_check
      _
    $region15: #{tpu_custom_call.1} parent=1 // pred_check_branch
      %47 = sbr.rel (0) target = $region17
    $region16: #{tpu_custom_call.1} parent=1 // pred_region
      %49 = vsyncadd [#allocation3], 0
      %s51 = sshll.u32 [#allocation2], 4
      %s52 = int_to_ptr.vmem [resolvable:$true] %s51
      %s53 = sshll.u32 %s3, 4
      %s54 = int_to_ptr.hbm [resolvable:$true] %s53
      %56 = dma.vmem_to_hbm [thread:$0]  %s52, 128, %s54, [#allocation3]
    $region17: #{tpu_custom_call.1} parent=1 // pred_fallthru
      _
    // Predicated region
    $region18: #{tpu_custom_call.1} parent=1 // pred_check
      _
    $region19: #{tpu_custom_call.1} parent=1 // pred_check_branch
      %58 = sbr.rel (0) target = $region21
    $region20: #{tpu_custom_call.1} parent=1 // pred_region
      %60 = dma.done [#allocation3], 128
    $region21: #{tpu_custom_call.1} parent=1 // pred_fallthru
      _
    %61 = vsyncpa [#allocation3], 1

</llo_original>
